<compile_context>
chip_gen: v7x
topology: tpu7x:2x2x1
jax: 0.10.0
libtpu: 0.0.40
codegen_flags: <defaults>
</compile_context>

<pallas_src>
import jax
import jax.numpy as jnp
import numpy as np
from jax.experimental import pallas as pl
from jax.experimental.pallas import tpu as pltpu

_LANES = 128


def _basic_block_kernel(x_ref, w1_ref, w2_ref, b1_ref, b2_ref, out_ref, pad_ref):
    # x_ref  : (NB, Rb, 128)  lane-dense flat images (rp image rows per sublane)
    # w*_ref : (3, 128, 128)  banded conv weights, BN scale folded in
    # b*_ref : (1, 128)       folded BN shifts, tiled to the flat lane layout
    # out_ref: (NB, Rb, 128)
    # pad_ref: (Rb+2, 128)    flat activation + one zero halo sublane above/below
    nb = x_ref.shape[0]
    rb = pad_ref.shape[0] - 2

    # Zero the scratch once per grid step: rows 0 and Rb+1 form the permanent
    # vertical halo; the interior is fully overwritten before every use, so this
    # stays correct under core-parallel grid sharding.  One dense full-width
    # store replaces the four masked 1-wide border stores of the old version.
    pad_ref[...] = jnp.zeros_like(pad_ref)

    b1 = b1_ref[...]
    b2 = b2_ref[...]

    def conv3x3(act, w_ref):
        # act: (Rb, 128) flat activation.  Three MXU matmuls against banded
        # weight matrices; the dy shift is a sublane-offset read of the padded
        # scratch, the dx (width) halo lives in the weights.  No im2col slices,
        # no reshapes, no lane concats.
        # TODO(synk): for real ResNet channel counts (C>=64) feed bf16 operands
        # to the MXU (keep preferred_element_type=f32 and the residual in f32).
        pad_ref[1:rb + 1, :] = act
        out = jnp.dot(pad_ref[0:rb, :], w_ref[0], preferred_element_type=jnp.float32)
        out += jnp.dot(pad_ref[1:rb + 1, :], w_ref[1], preferred_element_type=jnp.float32)
        out += jnp.dot(pad_ref[2:rb + 2, :], w_ref[2], preferred_element_type=jnp.float32)
        return out

    # NB is a small static int; a fully unrolled loop gives straight-line code.
    # TODO(synk): switch to lax.fori_loop(..., unroll=True) if NB grows large
    # enough that unrolled live ranges start to spill.
    for b in range(nb):
        x = x_ref[b].astype(jnp.float32)                        # (Rb, 128)
        h1 = jnp.maximum(conv3x3(x, w1_ref) + b1, 0.0)          # conv1+bn1+relu
        h2 = conv3x3(h1, w2_ref) + b2                           # conv2+bn2
        # identity residual is a vreg-aligned add in the same flat layout
        out_ref[b] = jnp.maximum(h2 + x, 0.0).astype(out_ref.dtype)


def _prep_w_banded(w, scale, width, rows_per_sublane):
    """(Co, Ci, 3, 3) OIHW conv weight -> (3, 128, 128) banded matrices.

    wf[oy] multiplies one flat padded-activation sublane (rows_per_sublane image
    rows packed along lanes) into one flat output sublane.  Width (dx) zero-pad
    is encoded by omitting out-of-range taps; height (dy) zero-pad is handled by
    the zero halo sublanes of the kernel scratch.  BN scale is folded per
    output channel."""
    w_np = np.asarray(jax.device_get(w), np.float32)
    s_np = np.asarray(jax.device_get(scale), np.float32)
    w_np = w_np * s_np[:, None, None, None]
    co, ci, kh, kw = w_np.shape
    rp = rows_per_sublane
    wf = np.zeros((kh, _LANES, _LANES), np.float32)
    for oy in range(kh):                  # sublane offset of the input slab
        for qin in range(rp):             # input row index within a sublane
            for p in range(rp):           # output row index within a sublane
                ky = rp * (oy - 1) + qin - p + 1
                if not (0 <= ky < kh):
                    continue
                for kx in range(kw):
                    for j in range(width):
                        w_in = j + kx - 1
                        if not (0 <= w_in < width):
                            continue      # horizontal zero-pad: tap omitted
                        r0 = qin * width * ci + w_in * ci
                        c0 = p * width * co + j * co
                        wf[oy, r0:r0 + ci, c0:c0 + co] = w_np[:, :, ky, kx].T
    return jnp.asarray(wf)


def basic_block_pallas(x_nchw, params, eps=1e-5):
    """x_nchw: (N, C, H, W) float32.  params: dict of PyTorch-shaped tensors."""
    N, C, H, W = x_nchw.shape
    Co = params["w1"].shape[0]
    assert C == Co, "identity residual requires in_planes == out_planes (downsample=None)"
    assert _LANES % (W * C) == 0, "flat layout needs W*C to divide 128"
    rp = _LANES // (W * C)               # image rows packed per 128-lane sublane
    assert H % rp == 0, "flat layout needs H divisible by rows-per-sublane"
    rb = H // rp

    # NCHW -> NHWC -> lane-dense flat (N, H/rp, 128).  Input DMA, residual add
    # and output DMA all use this layout (no sub-128-lane masked accesses).
    x_flat = jnp.transpose(x_nchw, (0, 2, 3, 1)).reshape(N, rb, _LANES)

    # Fold inference-mode BN into per-channel (scale, shift); scale goes into
    # the conv weights so the kernel only adds the shift.
    def _fold_bn(gamma, beta, mean, var):
        scale = gamma / jnp.sqrt(var + eps)
        shift = beta - mean * scale
        return scale, shift

    s1, sh1 = _fold_bn(params["bn1_g"], params["bn1_b"], params["bn1_m"], params["bn1_v"])
    s2, sh2 = _fold_bn(params["bn2_g"], params["bn2_b"], params["bn2_m"], params["bn2_v"])

    w1 = _prep_w_banded(params["w1"], s1, W, rp)        # (3, 128, 128)
    w2 = _prep_w_banded(params["w2"], s2, W, rp)
    b1 = jnp.tile(sh1, rp * W).reshape(1, _LANES)
    b2 = jnp.tile(sh2, rp * W).reshape(1, _LANES)

    # Batch-blocked grid: 2 fat steps (one per TensorCore on v7x), N//2 images
    # per step iterated inside the kernel, so single-TC v5e/v6e pay the per-step
    # pipeline overhead at most twice instead of N times.
    G = 2 if (N >= 2 and N % 2 == 0) else 1
    NB = N // G

    grid_spec = pltpu.PrefetchScalarGridSpec(
        num_scalar_prefetch=0,
        grid=(G,),
        in_specs=[
            pl.BlockSpec((NB, rb, _LANES), lambda g: (g, 0, 0)),
            pl.BlockSpec((3, _LANES, _LANES), lambda g: (0, 0, 0)),
            pl.BlockSpec((3, _LANES, _LANES), lambda g: (0, 0, 0)),
            pl.BlockSpec((1, _LANES), lambda g: (0, 0)),
            pl.BlockSpec((1, _LANES), lambda g: (0, 0)),
        ],
        out_specs=pl.BlockSpec((NB, rb, _LANES), lambda g: (g, 0, 0)),
        scratch_shapes=[pltpu.VMEM((rb + 2, _LANES), jnp.float32)],
    )

    out = pl.pallas_call(
        _basic_block_kernel,
        out_shape=jax.ShapeDtypeStruct((N, rb, _LANES), x_nchw.dtype),
        grid_spec=grid_spec,
        compiler_params=pltpu.CompilerParams(dimension_semantics=("parallel",)),
        # TODO(synk): for real ResNet shapes add an H-tiled grid axis (row
        # blocks with a one-sublane halo) and set vmem_limit_bytes sized for the
        # v7x 64 MiB VMEM budget before allowing bigger tiles on v5e/v6e.
    )(x_flat, w1, w2, b1, b2)

    out_nhwc = out.reshape(N, H, W, C)
    return jnp.transpose(out_nhwc, (0, 3, 1, 2))        # back to NCHW


def basic_block_reference(x_nchw, params, eps=1e-5):
    """Pure-JAX reference mirroring the PyTorch forward (inference-mode BN)."""
    def conv(x, w):
        return jax.lax.conv_general_dilated(
            x, w, window_strides=(1, 1), padding=((1, 1), (1, 1)),
            dimension_numbers=("NCHW", "OIHW", "NCHW"))

    def bn(x, g, b, m, v):
        g = g.reshape(1, -1, 1, 1); b = b.reshape(1, -1, 1, 1)
        m = m.reshape(1, -1, 1, 1); v = v.reshape(1, -1, 1, 1)
        return g * (x - m) / jnp.sqrt(v + eps) + b

    out = conv(x_nchw, params["w1"])
    out = jnp.maximum(bn(out, params["bn1_g"], params["bn1_b"], params["bn1_m"], params["bn1_v"]), 0.0)
    out = conv(out, params["w2"])
    out = bn(out, params["bn2_g"], params["bn2_b"], params["bn2_m"], params["bn2_v"])
    return jnp.maximum(out + x_nchw, 0.0)


def make_params(key, in_planes, out_planes):
    ks = jax.random.split(key, 4)
    fan_in = in_planes * 9
    std = (2.0 / fan_in) ** 0.5
    return {
        "w1": jax.random.normal(ks[0], (out_planes, in_planes, 3, 3), jnp.float32) * std,
        "w2": jax.random.normal(ks[1], (out_planes, out_planes, 3, 3), jnp.float32) * std,
        "bn1_g": jax.random.uniform(ks[2], (out_planes,), jnp.float32, 0.5, 1.5),
        "bn1_b": jax.random.normal(ks[3], (out_planes,), jnp.float32) * 0.1,
        "bn1_m": jnp.zeros((out_planes,), jnp.float32),
        "bn1_v": jnp.ones((out_planes,), jnp.float32),
        "bn2_g": jnp.ones((out_planes,), jnp.float32),
        "bn2_b": jnp.zeros((out_planes,), jnp.float32),
        "bn2_m": jnp.zeros((out_planes,), jnp.float32),
        "bn2_v": jnp.ones((out_planes,), jnp.float32),
    }


if __name__ == "__main__":
    key = jax.random.PRNGKey(0)
    kx, kp = jax.random.split(key)

    N, C, H, W = 2, 4, 16, 16
    x = jax.random.normal(kx, (N, C, H, W), jnp.float32)
    params = make_params(kp, in_planes=C, out_planes=C)

    out = basic_block_pallas(x, params)
    out = jax.block_until_ready(out)

    ref = basic_block_reference(x, params)
    assert out.shape == (N, C, H, W)
    assert jnp.allclose(out, ref, atol=1e-4, rtol=1e-4), "Pallas output mismatch vs reference"

    print("KERNEL_OK")
</pallas_src>

<mosaic_0001>
module attributes {stable_mosaic.version = 11 : i64} {
  func.func @_basic_block_kernel(%arg0: i32, %arg1: memref<1x8x128xf32, #tpu.memory_space<vmem>>, %arg2: memref<3x128x128xf32, #tpu.memory_space<vmem>>, %arg3: memref<3x128x128xf32, #tpu.memory_space<vmem>>, %arg4: memref<1x128xf32, #tpu.memory_space<vmem>>, %arg5: memref<1x128xf32, #tpu.memory_space<vmem>>, %arg6: memref<1x8x128xf32, #tpu.memory_space<vmem>>, %arg7: memref<10x128xf32, #tpu.memory_space<vmem>>) attributes {dimension_semantics = [#tpu.dimension_semantics<parallel>], iteration_bounds = array<i64: 2>, scalar_prefetch = 0 : i64, scratch_operands = 1 : i64, tpu.core_type = #tpu.core_type<tc>, window_params = [{transform_indices = @transform_0, window_bounds = array<i64: 1, 8, 128>}, {pipeline_mode = #tpu.pipeline_mode<synchronous>, transform_indices = @transform_1, window_bounds = array<i64: 3, 128, 128>}, {pipeline_mode = #tpu.pipeline_mode<synchronous>, transform_indices = @transform_2, window_bounds = array<i64: 3, 128, 128>}, {pipeline_mode = #tpu.pipeline_mode<synchronous>, transform_indices = @transform_3, window_bounds = array<i64: 1, 128>}, {pipeline_mode = #tpu.pipeline_mode<synchronous>, transform_indices = @transform_4, window_bounds = array<i64: 1, 128>}, {transform_indices = @transform_5, window_bounds = array<i64: 1, 8, 128>}]} {
    %cst = arith.constant 0.000000e+00 : f32
    %0 = vector.broadcast %cst : f32 to vector<10x128xf32>
    %c0 = arith.constant 0 : index
    %c0_0 = arith.constant 0 : index
    %1 = vector.load %arg7[%c0, %c0_0] : memref<10x128xf32, #tpu.memory_space<vmem>>, vector<10x128xf32>
    tpu.vector_store %arg7[%c0, %c0_0], %0 {strides = array<i32>} : memref<10x128xf32, #tpu.memory_space<vmem>>, vector<10x128xf32>,
    %c0_1 = arith.constant 0 : index
    %c0_2 = arith.constant 0 : index
    %2 = vector.load %arg4[%c0_1, %c0_2] : memref<1x128xf32, #tpu.memory_space<vmem>>, vector<1x128xf32>
    %c0_3 = arith.constant 0 : index
    %c0_4 = arith.constant 0 : index
    %3 = vector.load %arg5[%c0_3, %c0_4] : memref<1x128xf32, #tpu.memory_space<vmem>>, vector<1x128xf32>
    %c0_5 = arith.constant 0 : index
    %c0_6 = arith.constant 0 : index
    %c0_7 = arith.constant 0 : index
    %4 = vector.load %arg1[%c0_5, %c0_6, %c0_7] : memref<1x8x128xf32, #tpu.memory_space<vmem>>, vector<1x8x128xf32>
    %5 = vector.shape_cast %4 : vector<1x8x128xf32> to vector<8x128xf32>
    %c1 = arith.constant 1 : index
    %c0_8 = arith.constant 0 : index
    %6 = vector.load %arg7[%c1, %c0_8] : memref<10x128xf32, #tpu.memory_space<vmem>>, vector<8x128xf32>
    tpu.vector_store %arg7[%c1, %c0_8], %5 {strides = array<i32>} : memref<10x128xf32, #tpu.memory_space<vmem>>, vector<8x128xf32>,
    %c0_9 = arith.constant 0 : index
    %c0_10 = arith.constant 0 : index
    %7 = vector.load %arg7[%c0_9, %c0_10] : memref<10x128xf32, #tpu.memory_space<vmem>>, vector<8x128xf32>
    %c0_11 = arith.constant 0 : index
    %c0_12 = arith.constant 0 : index
    %c0_13 = arith.constant 0 : index
    %8 = vector.load %arg2[%c0_11, %c0_12, %c0_13] : memref<3x128x128xf32, #tpu.memory_space<vmem>>, vector<1x128x128xf32>
    %9 = vector.shape_cast %8 : vector<1x128x128xf32> to vector<128x128xf32>
    %cst_14 = arith.constant dense<0.000000e+00> : vector<8x128xf32>
    %10 = tpu.matmul %7, %9, %cst_14 {dimension_numbers = #tpu.dot_dimension_numbers<[1], [0], [0], [1], [0, 0, 1, 1], [], []>} : vector<8x128xf32>, vector<128x128xf32>, vector<8x128xf32> -> vector<8x128xf32>
    %c1_15 = arith.constant 1 : index
    %c0_16 = arith.constant 0 : index
    %11 = vector.load %arg7[%c1_15, %c0_16] : memref<10x128xf32, #tpu.memory_space<vmem>>, vector<8x128xf32>
    %c1_17 = arith.constant 1 : index
    %c0_18 = arith.constant 0 : index
    %c0_19 = arith.constant 0 : index
    %12 = vector.load %arg2[%c1_17, %c0_18, %c0_19] : memref<3x128x128xf32, #tpu.memory_space<vmem>>, vector<1x128x128xf32>
    %13 = vector.shape_cast %12 : vector<1x128x128xf32> to vector<128x128xf32>
    %cst_20 = arith.constant dense<0.000000e+00> : vector<8x128xf32>
    %14 = tpu.matmul %11, %13, %cst_20 {dimension_numbers = #tpu.dot_dimension_numbers<[1], [0], [0], [1], [0, 0, 1, 1], [], []>} : vector<8x128xf32>, vector<128x128xf32>, vector<8x128xf32> -> vector<8x128xf32>
    %15 = arith.addf %10, %14 : vector<8x128xf32>
    %c2 = arith.constant 2 : index
    %c0_21 = arith.constant 0 : index
    %16 = vector.load %arg7[%c2, %c0_21] : memref<10x128xf32, #tpu.memory_space<vmem>>, vector<8x128xf32>
    %c2_22 = arith.constant 2 : index
    %c0_23 = arith.constant 0 : index
    %c0_24 = arith.constant 0 : index
    %17 = vector.load %arg2[%c2_22, %c0_23, %c0_24] : memref<3x128x128xf32, #tpu.memory_space<vmem>>, vector<1x128x128xf32>
    %18 = vector.shape_cast %17 : vector<1x128x128xf32> to vector<128x128xf32>
    %cst_25 = arith.constant dense<0.000000e+00> : vector<8x128xf32>
    %19 = tpu.matmul %16, %18, %cst_25 {dimension_numbers = #tpu.dot_dimension_numbers<[1], [0], [0], [1], [0, 0, 1, 1], [], []>} : vector<8x128xf32>, vector<128x128xf32>, vector<8x128xf32> -> vector<8x128xf32>
    %20 = arith.addf %15, %19 : vector<8x128xf32>
    %21 = vector.broadcast %2 : vector<1x128xf32> to vector<8x128xf32>
    %22 = arith.addf %20, %21 : vector<8x128xf32>
    %cst_26 = arith.constant 0.000000e+00 : f32
    %23 = vector.broadcast %cst_26 : f32 to vector<8x128xf32>
    %24 = arith.maximumf %22, %23 : vector<8x128xf32>
    %c1_27 = arith.constant 1 : index
    %c0_28 = arith.constant 0 : index
    %25 = vector.load %arg7[%c1_27, %c0_28] : memref<10x128xf32, #tpu.memory_space<vmem>>, vector<8x128xf32>
    tpu.vector_store %arg7[%c1_27, %c0_28], %24 {strides = array<i32>} : memref<10x128xf32, #tpu.memory_space<vmem>>, vector<8x128xf32>,
    %c0_29 = arith.constant 0 : index
    %c0_30 = arith.constant 0 : index
    %26 = vector.load %arg7[%c0_29, %c0_30] : memref<10x128xf32, #tpu.memory_space<vmem>>, vector<8x128xf32>
    %c0_31 = arith.constant 0 : index
    %c0_32 = arith.constant 0 : index
    %c0_33 = arith.constant 0 : index
    %27 = vector.load %arg3[%c0_31, %c0_32, %c0_33] : memref<3x128x128xf32, #tpu.memory_space<vmem>>, vector<1x128x128xf32>
    %28 = vector.shape_cast %27 : vector<1x128x128xf32> to vector<128x128xf32>
    %cst_34 = arith.constant dense<0.000000e+00> : vector<8x128xf32>
    %29 = tpu.matmul %26, %28, %cst_34 {dimension_numbers = #tpu.dot_dimension_numbers<[1], [0], [0], [1], [0, 0, 1, 1], [], []>} : vector<8x128xf32>, vector<128x128xf32>, vector<8x128xf32> -> vector<8x128xf32>
    %c1_35 = arith.constant 1 : index
    %c0_36 = arith.constant 0 : index
    %30 = vector.load %arg7[%c1_35, %c0_36] : memref<10x128xf32, #tpu.memory_space<vmem>>, vector<8x128xf32>
    %c1_37 = arith.constant 1 : index
    %c0_38 = arith.constant 0 : index
    %c0_39 = arith.constant 0 : index
    %31 = vector.load %arg3[%c1_37, %c0_38, %c0_39] : memref<3x128x128xf32, #tpu.memory_space<vmem>>, vector<1x128x128xf32>
    %32 = vector.shape_cast %31 : vector<1x128x128xf32> to vector<128x128xf32>
    %cst_40 = arith.constant dense<0.000000e+00> : vector<8x128xf32>
    %33 = tpu.matmul %30, %32, %cst_40 {dimension_numbers = #tpu.dot_dimension_numbers<[1], [0], [0], [1], [0, 0, 1, 1], [], []>} : vector<8x128xf32>, vector<128x128xf32>, vector<8x128xf32> -> vector<8x128xf32>
    %34 = arith.addf %29, %33 : vector<8x128xf32>
    %c2_41 = arith.constant 2 : index
    %c0_42 = arith.constant 0 : index
    %35 = vector.load %arg7[%c2_41, %c0_42] : memref<10x128xf32, #tpu.memory_space<vmem>>, vector<8x128xf32>
    %c2_43 = arith.constant 2 : index
    %c0_44 = arith.constant 0 : index
    %c0_45 = arith.constant 0 : index
    %36 = vector.load %arg3[%c2_43, %c0_44, %c0_45] : memref<3x128x128xf32, #tpu.memory_space<vmem>>, vector<1x128x128xf32>
    %37 = vector.shape_cast %36 : vector<1x128x128xf32> to vector<128x128xf32>
    %cst_46 = arith.constant dense<0.000000e+00> : vector<8x128xf32>
    %38 = tpu.matmul %35, %37, %cst_46 {dimension_numbers = #tpu.dot_dimension_numbers<[1], [0], [0], [1], [0, 0, 1, 1], [], []>} : vector<8x128xf32>, vector<128x128xf32>, vector<8x128xf32> -> vector<8x128xf32>
    %39 = arith.addf %34, %38 : vector<8x128xf32>
    %40 = vector.broadcast %3 : vector<1x128xf32> to vector<8x128xf32>
    %41 = arith.addf %39, %40 : vector<8x128xf32>
    %42 = arith.addf %41, %5 : vector<8x128xf32>
    %cst_47 = arith.constant 0.000000e+00 : f32
    %43 = vector.broadcast %cst_47 : f32 to vector<8x128xf32>
    %44 = arith.maximumf %42, %43 : vector<8x128xf32>
    %c0_48 = arith.constant 0 : index
    %c0_49 = arith.constant 0 : index
    %c0_50 = arith.constant 0 : index
    %45 = vector.load %arg6[%c0_48, %c0_49, %c0_50] : memref<1x8x128xf32, #tpu.memory_space<vmem>>, vector<1x8x128xf32>
    %46 = vector.shape_cast %45 : vector<1x8x128xf32> to vector<8x128xf32>
    %47 = vector.shape_cast %44 : vector<8x128xf32> to vector<1x8x128xf32>
    tpu.vector_store %arg6[%c0_48, %c0_49, %c0_50], %47 {strides = array<i32>} : memref<1x8x128xf32, #tpu.memory_space<vmem>>, vector<1x8x128xf32>,
    return
  }
  func.func @transform_0(%arg0: i32) -> (i32, i32, i32) {
    %c0_i32 = arith.constant 0 : i32
    %c0_i32_0 = arith.constant 0 : i32
    %c0_i32_1 = arith.constant 0 : i32
    return %arg0, %c0_i32, %c0_i32_0 : i32, i32, i32
  }
  func.func @transform_1(%arg0: i32) -> (i32, i32, i32) {
    %c0_i32 = arith.constant 0 : i32
    %c0_i32_0 = arith.constant 0 : i32
    %c0_i32_1 = arith.constant 0 : i32
    %c0_i32_2 = arith.constant 0 : i32
    return %c0_i32, %c0_i32_0, %c0_i32_1 : i32, i32, i32
  }
  func.func @transform_2(%arg0: i32) -> (i32, i32, i32) {
    %c0_i32 = arith.constant 0 : i32
    %c0_i32_0 = arith.constant 0 : i32
    %c0_i32_1 = arith.constant 0 : i32
    %c0_i32_2 = arith.constant 0 : i32
    return %c0_i32, %c0_i32_0, %c0_i32_1 : i32, i32, i32
  }
  func.func @transform_3(%arg0: i32) -> (i32, i32) {
    %c0_i32 = arith.constant 0 : i32
    %c0_i32_0 = arith.constant 0 : i32
    %c0_i32_1 = arith.constant 0 : i32
    return %c0_i32, %c0_i32_0 : i32, i32
  }
  func.func @transform_4(%arg0: i32) -> (i32, i32) {
    %c0_i32 = arith.constant 0 : i32
    %c0_i32_0 = arith.constant 0 : i32
    %c0_i32_1 = arith.constant 0 : i32
    return %c0_i32, %c0_i32_0 : i32, i32
  }
  func.func @transform_5(%arg0: i32) -> (i32, i32, i32) {
    %c0_i32 = arith.constant 0 : i32
    %c0_i32_0 = arith.constant 0 : i32
    %c0_i32_1 = arith.constant 0 : i32
    return %arg0, %c0_i32, %c0_i32_0 : i32, i32, i32
  }
}

</mosaic_0001>

<llo_original>
// kernel: tpu_custom_call.1
$region0: #{tpu_custom_call.1}
  #allocation0 [shape = 'u32[]', space=smem, size = 0x4, offset = 0x4, fixed_abs, tag = 'smem constant byte address 0x4 - core index']
  #allocation1 [shape = 'u32[144,128]{1,0:T(1,128)}', space=vmem, size = 0x12000, scoped, tag = 'internal scratch']
  #allocation2 [shape = 'f32[10,128]{1,0:T(8,128)}', space=vmem, size = 0x2000, scoped, tag = 'scratch operand']
  %s0 = inlined_call_operand.hbm [shape: f32[2,8,128], index: 0, kind: input, shape index: {}]
  %s1 = inlined_call_operand.hbm [shape: f32[3,128,128], index: 1, kind: input, shape index: {}]
  %s2 = inlined_call_operand.hbm [shape: f32[3,128,128], index: 2, kind: input, shape index: {}]
  %s3 = inlined_call_operand.vmem [shape: f32[1,128], index: 3, kind: input, shape index: {}]
  %s4 = inlined_call_operand.vmem [shape: f32[1,128], index: 4, kind: input, shape index: {}]
  %s5 = inlined_call_operand.hbm [shape: f32[2,8,128], index: 5, kind: output, shape index: {}]
  %s6 = sld [smem:[#allocation0]]
  $region65: #{tpu_custom_call.1} parent=0
    _
  %s8 = ssub.s32 1, %s6
  %s9 = scalar_select 0, %s8, %s6
  $region1: #{tpu_custom_call.1} parent=0
    #allocation3 [shape = 'u8[8192]{0}', space=vmem, size = 0x2000, scoped, tag = 'input window, operand 0']
    #allocation4 [shape = 's32[2]{0}', space=sflag, size = 0x8, scoped, tag = 'scoped memory for tpu_custom_call.1']
    #allocation5 [shape = 's32[2]{0}', space=sflag, size = 0x8, scoped, tag = 'scoped memory for tpu_custom_call.1']
    #allocation6 [shape = 'u8[196608]{0}', space=vmem, size = 0x30000, scoped, tag = 'input window, operand 1, single buffered']
    #allocation7 [shape = 's32[1]{0}', space=sflag, size = 0x4, scoped, tag = 'scoped memory for tpu_custom_call.1']
    #allocation8 [shape = 'u8[196608]{0}', space=vmem, size = 0x30000, scoped, tag = 'input window, operand 2, single buffered']
    #allocation9 [shape = 'u8[8192]{0}', space=vmem, size = 0x2000, scoped, tag = 'output window, operand 0']
    %10 = vsyncpa [#allocation4], 0
    %s11 = scalar_lea.sflag [#allocation4], 1
    %12 = vsyncpa %s11, 0
    %13 = vsyncpa [#allocation7], 0
    %14 = vsyncpa [#allocation5], 0
    %s15 = scalar_lea.sflag [#allocation5], 1
    %16 = vsyncpa %s15, 0
    loop: start=0, step=1, limit=4
    $region2: #{tpu_custom_call.1} parent=1 // loop_pre_header
      _
    $region3: #{tpu_custom_call.1} parent=1 // loop_header
      %s18 = sphi 0, %s22
      %p19 = scmp.ge.s32.totalorder %s18, 4
      %s28 = sphi 0, %s30
      %s31 = sphi 0, %s28
      %s32 = sphi 0, %s31
      %s48 = sphi 0, %s32
      %s52 = sphi 0, %s52
      %s54 = sphi 0, %s52
      %s55 = sphi 0, %s54
      %s69 = sphi 0, %s55
      %s73 = sphi 0, %s73
      %s75 = sphi 0, %s73
      %s76 = sphi 0, %s75
      %s90 = sphi 0, %s76
      %s94 = sphi 0, %s94
      %s96 = sphi 0, %s94
      %s97 = sphi 0, %s96
      %s111 = sphi 0, %s97
      %s115 = sphi 0, %s115
      %s117 = sphi 0, %s115
      %s118 = sphi 0, %s117
      %s132 = sphi 0, %s118
      %s138 = sphi 0, %s140
      %s141 = sphi 0, %s138
      %s142 = sphi 0, %s141
      %s158 = sphi 0, %s142
    $region4: #{tpu_custom_call.1} parent=1 // loop_header_branch
      %21 = sbr.rel (%p19) target = $region8
    $region5: #{tpu_custom_call.1} parent=1 // loop_body
      %s23 = ssub.s32 %s18, 1
      %s24 = ssub.s32 %s18, 2
      %s25 = sadd.s32 %s18, 1
      %s26 = ssub.s32 %s18, %s25
      %p27 = scmp.eq.s32.totalorder %s26, 0
      %s29 = sadd.s32 %s28, 1
      %s30 = scalar_select %p27, %s28, %s29
      %p33 = pneg %p27
      %p34 = scmp.eq.s32.totalorder %s18, 1
      %p35 = por %p33, %p34
      %p36 = scmp.ne.s32.totalorder %s28, %s31
      %p37 = scmp.eq.s32.totalorder %s18, 0
      %p38 = por %p36, %p37
      %p39 = scmp.ne.s32.totalorder %s28, %s31
      %p40 = scmp.eq.s32.totalorder %s23, 1
      %p41 = por %p39, %p40
      %p42 = scmp.ne.s32.totalorder %s31, %s32
      %p43 = scmp.eq.s32.totalorder %s23, 0
      %p44 = por %p42, %p43
      %p45 = scmp.ne.s32.totalorder %s31, %s32
      %p46 = scmp.eq.s32.totalorder %s24, 1
      %p47 = por %p45, %p46
      %p49 = scmp.ne.s32.totalorder %s32, %s48
      %p50 = scmp.eq.s32.totalorder %s24, 0
      %p51 = por %p49, %p50
      %s53 = sadd.s32 %s52, 1
      %p56 = scmp.eq.s32.totalorder %s18, 1
      %p57 = scmp.ne.s32.totalorder %s52, %s54
      %p58 = scmp.eq.s32.totalorder %s18, 0
      %p59 = por %p57, %p58
      %p60 = scmp.ne.s32.totalorder %s52, %s54
      %p61 = scmp.eq.s32.totalorder %s23, 1
      %p62 = por %p60, %p61
      %p63 = scmp.ne.s32.totalorder %s54, %s55
      %p64 = scmp.eq.s32.totalorder %s23, 0
      %p65 = por %p63, %p64
      %p66 = scmp.ne.s32.totalorder %s54, %s55
      %p67 = scmp.eq.s32.totalorder %s24, 1
      %p68 = por %p66, %p67
      %p70 = scmp.ne.s32.totalorder %s55, %s69
      %p71 = scmp.eq.s32.totalorder %s24, 0
      %p72 = por %p70, %p71
      %s74 = sadd.s32 %s73, 1
      %p77 = scmp.eq.s32.totalorder %s18, 1
      %p78 = scmp.ne.s32.totalorder %s73, %s75
      %p79 = scmp.eq.s32.totalorder %s18, 0
      %p80 = por %p78, %p79
      %p81 = scmp.ne.s32.totalorder %s73, %s75
      %p82 = scmp.eq.s32.totalorder %s23, 1
      %p83 = por %p81, %p82
      %p84 = scmp.ne.s32.totalorder %s75, %s76
      %p85 = scmp.eq.s32.totalorder %s23, 0
      %p86 = por %p84, %p85
      %p87 = scmp.ne.s32.totalorder %s75, %s76
      %p88 = scmp.eq.s32.totalorder %s24, 1
      %p89 = por %p87, %p88
      %p91 = scmp.ne.s32.totalorder %s76, %s90
      %p92 = scmp.eq.s32.totalorder %s24, 0
      %p93 = por %p91, %p92
      %s95 = sadd.s32 %s94, 1
      %p98 = scmp.eq.s32.totalorder %s18, 1
      %p99 = scmp.ne.s32.totalorder %s94, %s96
      %p100 = scmp.eq.s32.totalorder %s18, 0
      %p101 = por %p99, %p100
      %p102 = scmp.ne.s32.totalorder %s94, %s96
      %p103 = scmp.eq.s32.totalorder %s23, 1
      %p104 = por %p102, %p103
      %p105 = scmp.ne.s32.totalorder %s96, %s97
      %p106 = scmp.eq.s32.totalorder %s23, 0
      %p107 = por %p105, %p106
      %p108 = scmp.ne.s32.totalorder %s96, %s97
      %p109 = scmp.eq.s32.totalorder %s24, 1
      %p110 = por %p108, %p109
      %p112 = scmp.ne.s32.totalorder %s97, %s111
      %p113 = scmp.eq.s32.totalorder %s24, 0
      %p114 = por %p112, %p113
      %s116 = sadd.s32 %s115, 1
      %p119 = scmp.eq.s32.totalorder %s18, 1
      %p120 = scmp.ne.s32.totalorder %s115, %s117
      %p121 = scmp.eq.s32.totalorder %s18, 0
      %p122 = por %p120, %p121
      %p123 = scmp.ne.s32.totalorder %s115, %s117
      %p124 = scmp.eq.s32.totalorder %s23, 1
      %p125 = por %p123, %p124
      %p126 = scmp.ne.s32.totalorder %s117, %s118
      %p127 = scmp.eq.s32.totalorder %s23, 0
      %p128 = por %p126, %p127
      %p129 = scmp.ne.s32.totalorder %s117, %s118
      %p130 = scmp.eq.s32.totalorder %s24, 1
      %p131 = por %p129, %p130
      %p133 = scmp.ne.s32.totalorder %s118, %s132
      %p134 = scmp.eq.s32.totalorder %s24, 0
      %p135 = por %p133, %p134
      %s136 = ssub.s32 %s18, %s25
      %p137 = scmp.eq.s32.totalorder %s136, 0
      %s139 = sadd.s32 %s138, 1
      %s140 = scalar_select %p137, %s138, %s139
      %p143 = pneg %p137
      %p144 = scmp.eq.s32.totalorder %s18, 1
      %p145 = por %p143, %p144
      %p146 = scmp.ne.s32.totalorder %s138, %s141
      %p147 = scmp.eq.s32.totalorder %s18, 0
      %p148 = por %p146, %p147
      %p149 = scmp.ne.s32.totalorder %s138, %s141
      %p150 = scmp.eq.s32.totalorder %s23, 1
      %p151 = por %p149, %p150
      %p152 = scmp.ne.s32.totalorder %s141, %s142
      %p153 = scmp.eq.s32.totalorder %s23, 0
      %p154 = por %p152, %p153
      %p155 = scmp.ne.s32.totalorder %s141, %s142
      %p156 = scmp.eq.s32.totalorder %s24, 1
      %p157 = por %p155, %p156
      %p159 = scmp.ne.s32.totalorder %s142, %s158
      %p160 = scmp.eq.s32.totalorder %s24, 0
      %p161 = por %p159, %p160
      %p162 = scmp.le.s32.totalorder 1, %s18
      %p163 = scmp.lt.s32.totalorder %s18, 3
      %p164 = pnand %p162, %p163
      %p165 = pneg %p164
      // Predicated region
      $region9: #{tpu_custom_call.1} parent=5 // pred_check
        _
      $region10: #{tpu_custom_call.1} parent=5 // pred_check_branch
        %167 = sbr.rel (%p164) target = $region12
      $region11: #{tpu_custom_call.1} parent=5 // pred_region
        %s168 = ssub.s32 %s18, 1
        // Predicated region
        $region13: #{tpu_custom_call.1} parent=11 // pred_check
          %p169 = pneg %p65
        $region14: #{tpu_custom_call.1} parent=11 // pred_check_branch
          %171 = sbr.rel (%p169) target = $region16
        $region15: #{tpu_custom_call.1} parent=11 // pred_region
          %s173 = ssub.s32 6144, 6144
          %174 = vsyncadd [#allocation7], %s173
          %s175 = sshll.u32 [#allocation6], 4
          %s176 = int_to_ptr.vmem [resolvable:$true] %s175
          %181 = dma.hbm_to_vmem [thread:$0]  %s1, 6144, %s176, [#allocation7], 128, 128, 8
        $region16: #{tpu_custom_call.1} parent=11 // pred_fallthru
          _
        // Predicated region
        $region17: #{tpu_custom_call.1} parent=11 // pred_check
          %p182 = pneg %p86
        $region18: #{tpu_custom_call.1} parent=11 // pred_check_branch
          %184 = sbr.rel (%p182) target = $region20
        $region19: #{tpu_custom_call.1} parent=11 // pred_region
          %s186 = ssub.s32 6144, 6144
          %187 = vsyncadd [#allocation7], %s186
          %s188 = sshll.u32 [#allocation8], 4
          %s189 = int_to_ptr.vmem [resolvable:$true] %s188
          %194 = dma.hbm_to_vmem [thread:$0]  %s2, 6144, %s189, [#allocation7], 128, 128, 8
        $region20: #{tpu_custom_call.1} parent=11 // pred_fallthru
          _
        // Predicated region
        $region21: #{tpu_custom_call.1} parent=11 // pred_check
          %p195 = pneg %p107
        $region22: #{tpu_custom_call.1} parent=11 // pred_check_branch
          %197 = sbr.rel (%p195) target = $region24
        $region23: #{tpu_custom_call.1} parent=11 // pred_region
          _
        $region24: #{tpu_custom_call.1} parent=11 // pred_fallthru
          _
        // Predicated region
        $region25: #{tpu_custom_call.1} parent=11 // pred_check
          %p198 = pneg %p128
        $region26: #{tpu_custom_call.1} parent=11 // pred_check_branch
          %200 = sbr.rel (%p198) target = $region28
        $region27: #{tpu_custom_call.1} parent=11 // pred_region
          _
        $region28: #{tpu_custom_call.1} parent=11 // pred_fallthru
          _
      $region12: #{tpu_custom_call.1} parent=5 // pred_fallthru
        _
      %p201 = scmp.lt.s32.totalorder %s18, 2
      // Predicated region
      $region29: #{tpu_custom_call.1} parent=5 // pred_check
        %p202 = pneg %p201
      $region30: #{tpu_custom_call.1} parent=5 // pred_check_branch
        %204 = sbr.rel (%p202) target = $region32
      $region31: #{tpu_custom_call.1} parent=5 // pred_region
        // Predicated region
        $region33: #{tpu_custom_call.1} parent=31 // pred_check
          %p205 = pneg %p38
        $region34: #{tpu_custom_call.1} parent=31 // pred_check_branch
          %207 = sbr.rel (%p205) target = $region36
        $region35: #{tpu_custom_call.1} parent=31 // pred_region
          %s208 = sand.u32 %s28, 1
          %s209 = scalar_lea.sflag [#allocation4], %s208
          %s210 = sand.u32 %s28, 1
          %s211 = smul.addr %s210, 8
          %s212 = scalar_lea.vmem [#allocation3], %s211
          %s214 = ssub.s32 128, 128
          %215 = vsyncadd %s209, %s214
          %s216 = smul.addr %s18, 128
          %s217 = scalar_lea.hbm %s0, %s216
          %s219 = sshll.u32 %s212, 4
          %s220 = int_to_ptr.vmem [resolvable:$true] %s219
          %222 = dma.hbm_to_vmem [thread:$0]  %s217, 128, %s220, %s209
        $region36: #{tpu_custom_call.1} parent=31 // pred_fallthru
          _
      $region32: #{tpu_custom_call.1} parent=5 // pred_fallthru
        _
      %p223 = scmp.le.s32.totalorder 1, %s18
      %p224 = scmp.lt.s32.totalorder %s18, 3
      %p225 = pnand %p223, %p224
      %p226 = pneg %p225
      // Predicated region
      $region37: #{tpu_custom_call.1} parent=5 // pred_check
        _
      $region38: #{tpu_custom_call.1} parent=5 // pred_check_branch
        %228 = sbr.rel (%p225) target = $region40
      $region39: #{tpu_custom_call.1} parent=5 // pred_region
        %s229 = ssub.s32 %s18, 1
        %s230 = sand.u32 %s31, 1
        %s231 = scalar_lea.sflag [#allocation4], %s230
        %s232 = sand.u32 %s31, 1
        %s233 = smul.addr %s232, 8
        %s234 = scalar_lea.vmem [#allocation3], %s233
        // Predicated region
        $region41: #{tpu_custom_call.1} parent=39 // pred_check
          %p235 = pneg %p44
        $region42: #{tpu_custom_call.1} parent=39 // pred_check_branch
          %237 = sbr.rel (%p235) target = $region44
        $region43: #{tpu_custom_call.1} parent=39 // pred_region
          %238 = dma.done %s231, 128
        $region44: #{tpu_custom_call.1} parent=39 // pred_fallthru
          _
        // Predicated region
        $region45: #{tpu_custom_call.1} parent=39 // pred_check
          %p239 = pneg %p65
        $region46: #{tpu_custom_call.1} parent=39 // pred_check_branch
          %241 = sbr.rel (%p239) target = $region48
        $region47: #{tpu_custom_call.1} parent=39 // pred_region
          %242 = dma.done [#allocation7], 6144
        $region48: #{tpu_custom_call.1} parent=39 // pred_fallthru
          _
        // Predicated region
        $region49: #{tpu_custom_call.1} parent=39 // pred_check
          %p243 = pneg %p86
        $region50: #{tpu_custom_call.1} parent=39 // pred_check_branch
          %245 = sbr.rel (%p243) target = $region52
        $region51: #{tpu_custom_call.1} parent=39 // pred_region
          %246 = dma.done [#allocation7], 6144
        $region52: #{tpu_custom_call.1} parent=39 // pred_fallthru
          _
        %s247 = sand.u32 %s31, 1
        %s248 = scalar_lea.sflag [#allocation4], %s247
        %s249 = sand.u32 %s31, 1
        %s250 = smul.addr %s249, 8
        %s251 = scalar_lea.vmem [#allocation3], %s250
        %p252 = pneg %p44
        %p253 = pneg %p41
        %p254 = pneg %p65
        %p255 = pneg %p62
        %p256 = pneg %p86
        %p257 = pneg %p83
        %p258 = pneg %p107
        %p259 = pneg %p104
        %p260 = pneg %p128
        %p261 = pneg %p125
        %p262 = pneg %p154
        %p263 = pneg %p151
        %s264 = sand.u32 %s141, 1
        %s265 = scalar_lea.sflag [#allocation5], %s264
        %s266 = sand.u32 %s141, 1
        %s267 = smul.addr %s266, 8
        %s268 = scalar_lea.vmem [#allocation9], %s267
        %269 = vst [vmem:[#allocation2] sm:$0xff] 0.0
        %270 = vst [vmem:[#allocation2 + $0x8] sm:$0x3] 0.0
        %v271 = vld [vmem:[%s3] sm:$0x1]
        %v272 = vld [vmem:[%s4] sm:$0x1]
        %v273 = vld [vmem:[%s234] sm:$0xff]
        %274 = vst [vmem:[#allocation2 + $0x1] sm:$0xff] %v273
        %v275 = vld [vmem:[#allocation2] sm:$0xff]
        %v276 = vld [vmem:[#allocation6] sm:$0xff]
        %v277 = vld [vmem:[#allocation6 + $0x8] sm:$0xff]
        %v278 = vld [vmem:[#allocation6 + $0x10] sm:$0xff]
        %v279 = vld [vmem:[#allocation6 + $0x18] sm:$0xff]
        %v280 = vld [vmem:[#allocation6 + $0x20] sm:$0xff]
        %v281 = vld [vmem:[#allocation6 + $0x28] sm:$0xff]
        %v282 = vld [vmem:[#allocation6 + $0x30] sm:$0xff]
        %v283 = vld [vmem:[#allocation6 + $0x38] sm:$0xff]
        %v284 = vld [vmem:[#allocation6 + $0x40] sm:$0xff]
        %v285 = vld [vmem:[#allocation6 + $0x48] sm:$0xff]
        %v286 = vld [vmem:[#allocation6 + $0x50] sm:$0xff]
        %v287 = vld [vmem:[#allocation6 + $0x58] sm:$0xff]
        %v288 = vld [vmem:[#allocation6 + $0x60] sm:$0xff]
        %v289 = vld [vmem:[#allocation6 + $0x68] sm:$0xff]
        %v290 = vld [vmem:[#allocation6 + $0x70] sm:$0xff]
        %v291 = vld [vmem:[#allocation6 + $0x78] sm:$0xff]
        %v292 = vld [vmem:[#allocation2 + $0x1] sm:$0xff]
        %s293 = scalar_lea.vmem [#allocation6], 128
        %v294 = vld [vmem:[%s293] sm:$0xff]
        %v295 = vld [vmem:[%s293 + $0x8] sm:$0xff]
        %v296 = vld [vmem:[%s293 + $0x10] sm:$0xff]
        %v297 = vld [vmem:[%s293 + $0x18] sm:$0xff]
        %v298 = vld [vmem:[%s293 + $0x20] sm:$0xff]
        %v299 = vld [vmem:[%s293 + $0x28] sm:$0xff]
        %v300 = vld [vmem:[%s293 + $0x30] sm:$0xff]
        %v301 = vld [vmem:[%s293 + $0x38] sm:$0xff]
        %v302 = vld [vmem:[%s293 + $0x40] sm:$0xff]
        %v303 = vld [vmem:[%s293 + $0x48] sm:$0xff]
        %v304 = vld [vmem:[%s293 + $0x50] sm:$0xff]
        %v305 = vld [vmem:[%s293 + $0x58] sm:$0xff]
        %v306 = vld [vmem:[%s293 + $0x60] sm:$0xff]
        %v307 = vld [vmem:[%s293 + $0x68] sm:$0xff]
        %v308 = vld [vmem:[%s293 + $0x70] sm:$0xff]
        %v309 = vld [vmem:[%s293 + $0x78] sm:$0xff]
        %310 = vmatprep.subr.mxu0 0.0
        %311 = vmatpush1.msra.mxu0 %v294
        %312 = vmatprep.subr.mxu0 0.0
        %313 = vmatpush1.msra.mxu0 %v295
        %314 = vmatprep.subr.mxu0 0.0
        %315 = vmatpush1.msra.mxu0 %v296
        %316 = vmatprep.subr.mxu0 0.0
        %317 = vmatpush1.msra.mxu0 %v297
        %318 = vmatprep.subr.mxu0 0.0
        %319 = vmatpush1.msra.mxu0 %v298
        %320 = vmatprep.subr.mxu0 0.0
        %321 = vmatpush1.msra.mxu0 %v299
        %322 = vmatprep.subr.mxu0 0.0
        %323 = vmatpush1.msra.mxu0 %v300
        %324 = vmatprep.subr.mxu0 0.0
        %325 = vmatpush1.msra.mxu0 %v301
        %326 = vmatprep.subr.mxu0 0.0
        %327 = vmatpush1.msra.mxu0 %v302
        %328 = vmatprep.subr.mxu0 0.0
        %329 = vmatpush1.msra.mxu0 %v303
        %330 = vmatprep.subr.mxu0 0.0
        %331 = vmatpush1.msra.mxu0 %v304
        %332 = vmatprep.subr.mxu0 0.0
        %333 = vmatpush1.msra.mxu0 %v305
        %334 = vmatprep.subr.mxu0 0.0
        %335 = vmatpush1.msra.mxu0 %v306
        %336 = vmatprep.subr.mxu0 0.0
        %337 = vmatpush1.msra.mxu0 %v307
        %338 = vmatprep.subr.mxu0 0.0
        %339 = vmatpush1.msra.mxu0 %v308
        %340 = vmatprep.subr.mxu0 0.0
        %341 = vmatpush1.msra.mxu0 %v309
        %342 = vmatprep.subr.mxu0 0.0
        %343 = vmatpush1.msra.mxu0 0.0
        %344 = vmatprep.subr.mxu0 0.0
        %345 = vmatpush1.msra.mxu0 0.0
        %346 = vmatprep.subr.mxu0 0.0
        %347 = vmatpush1.msra.mxu0 0.0
        %348 = vmatprep.subr.mxu0 0.0
        %349 = vmatpush1.msra.mxu0 0.0
        %350 = vmatprep.subr.mxu0 0.0
        %351 = vmatpush1.msra.mxu0 0.0
        %352 = vmatprep.subr.mxu0 0.0
        %353 = vmatpush1.msra.mxu0 0.0
        %354 = vmatprep.subr.mxu0 0.0
        %355 = vmatpush1.msra.mxu0 0.0
        %356 = vmatprep.subr.mxu0 0.0
        %357 = vmatpush1.msra.mxu0 0.0
        %358 = vmatprep.subr.mxu0 0.0
        %359 = vmatpush1.msra.mxu0 0.0
        %360 = vmatprep.subr.mxu0 0.0
        %361 = vmatpush1.msra.mxu0 0.0
        %362 = vmatprep.subr.mxu0 0.0
        %363 = vmatpush1.msra.mxu0 0.0
        %364 = vmatprep.subr.mxu0 0.0
        %365 = vmatpush1.msra.mxu0 0.0
        %366 = vmatprep.subr.mxu0 0.0
        %367 = vmatpush1.msra.mxu0 0.0
        %368 = vmatprep.subr.mxu0 0.0
        %369 = vmatpush1.msra.mxu0 0.0
        %370 = vmatprep.subr.mxu0 0.0
        %371 = vmatpush1.msra.mxu0 0.0
        %372 = vmatprep.subr.mxu0 0.0
        %373 = vmatpush1.msra.mxu0 0.0
        %374 = vmatprep.mubr.f32.mxu0 0.0
        %375 = vmatmul.mubr.f32.gmra.mrb[0].mxu0 %v292
        %v376 = vpop.f32.mrb[0].mxu0
        %v377 = vadd.f32 0.0, %v376
        %v378 = vpop.f32.mrb[0].mxu0
        %379 = vdwg.mxu0
        %380 = vmatprep.subr.mxu0 0.0
        %381 = vmatpush1.msra.mxu0 %v276
        %382 = vmatprep.subr.mxu0 0.0
        %383 = vmatpush1.msra.mxu0 %v277
        %384 = vmatprep.subr.mxu0 0.0
        %385 = vmatpush1.msra.mxu0 %v278
        %386 = vmatprep.subr.mxu0 0.0
        %387 = vmatpush1.msra.mxu0 %v279
        %388 = vmatprep.subr.mxu0 0.0
        %389 = vmatpush1.msra.mxu0 %v280
        %390 = vmatprep.subr.mxu0 0.0
        %391 = vmatpush1.msra.mxu0 %v281
        %392 = vmatprep.subr.mxu0 0.0
        %393 = vmatpush1.msra.mxu0 %v282
        %394 = vmatprep.subr.mxu0 0.0
        %395 = vmatpush1.msra.mxu0 %v283
        %396 = vmatprep.subr.mxu0 0.0
        %397 = vmatpush1.msra.mxu0 %v284
        %398 = vmatprep.subr.mxu0 0.0
        %399 = vmatpush1.msra.mxu0 %v285
        %400 = vmatprep.subr.mxu0 0.0
        %401 = vmatpush1.msra.mxu0 %v286
        %402 = vmatprep.subr.mxu0 0.0
        %403 = vmatpush1.msra.mxu0 %v287
        %404 = vmatprep.subr.mxu0 0.0
        %405 = vmatpush1.msra.mxu0 %v288
        %406 = vmatprep.subr.mxu0 0.0
        %407 = vmatpush1.msra.mxu0 %v289
        %408 = vmatprep.subr.mxu0 0.0
        %409 = vmatpush1.msra.mxu0 %v290
        %410 = vmatprep.subr.mxu0 0.0
        %411 = vmatpush1.msra.mxu0 %v291
        %412 = vmatprep.subr.mxu0 0.0
        %413 = vmatpush1.msra.mxu0 0.0
        %414 = vmatprep.subr.mxu0 0.0
        %415 = vmatpush1.msra.mxu0 0.0
        %416 = vmatprep.subr.mxu0 0.0
        %417 = vmatpush1.msra.mxu0 0.0
        %418 = vmatprep.subr.mxu0 0.0
        %419 = vmatpush1.msra.mxu0 0.0
        %420 = vmatprep.subr.mxu0 0.0
        %421 = vmatpush1.msra.mxu0 0.0
        %422 = vmatprep.subr.mxu0 0.0
        %423 = vmatpush1.msra.mxu0 0.0
        %424 = vmatprep.subr.mxu0 0.0
        %425 = vmatpush1.msra.mxu0 0.0
        %426 = vmatprep.subr.mxu0 0.0
        %427 = vmatpush1.msra.mxu0 0.0
        %428 = vmatprep.subr.mxu0 0.0
        %429 = vmatpush1.msra.mxu0 0.0
        %430 = vmatprep.subr.mxu0 0.0
        %431 = vmatpush1.msra.mxu0 0.0
        %432 = vmatprep.subr.mxu0 0.0
        %433 = vmatpush1.msra.mxu0 0.0
        %434 = vmatprep.subr.mxu0 0.0
        %435 = vmatpush1.msra.mxu0 0.0
        %436 = vmatprep.subr.mxu0 0.0
        %437 = vmatpush1.msra.mxu0 0.0
        %438 = vmatprep.subr.mxu0 0.0
        %439 = vmatpush1.msra.mxu0 0.0
        %440 = vmatprep.subr.mxu0 0.0
        %441 = vmatpush1.msra.mxu0 0.0
        %442 = vmatprep.subr.mxu0 0.0
        %443 = vmatpush1.msra.mxu0 0.0
        %444 = vmatprep.mubr.f32.mxu0 0.0
        %445 = vmatmul.mubr.f32.gmra.mrb[0].mxu0 %v275
        %v446 = vpop.f32.mrb[0].mxu0
        %v447 = vadd.f32 %v377, %v446
        %v448 = vpop.f32.mrb[0].mxu0
        %449 = vdwg.mxu0
        %v450 = vld [vmem:[#allocation2 + $0x2] sm:$0xff]
        %s451 = scalar_lea.vmem [#allocation6], 256
        %v452 = vld [vmem:[%s451] sm:$0xff]
        %v453 = vld [vmem:[%s451 + $0x8] sm:$0xff]
        %v454 = vld [vmem:[%s451 + $0x10] sm:$0xff]
        %v455 = vld [vmem:[%s451 + $0x18] sm:$0xff]
        %v456 = vld [vmem:[%s451 + $0x20] sm:$0xff]
        %v457 = vld [vmem:[%s451 + $0x28] sm:$0xff]
        %v458 = vld [vmem:[%s451 + $0x30] sm:$0xff]
        %v459 = vld [vmem:[%s451 + $0x38] sm:$0xff]
        %v460 = vld [vmem:[%s451 + $0x40] sm:$0xff]
        %v461 = vld [vmem:[%s451 + $0x48] sm:$0xff]
        %v462 = vld [vmem:[%s451 + $0x50] sm:$0xff]
        %v463 = vld [vmem:[%s451 + $0x58] sm:$0xff]
        %v464 = vld [vmem:[%s451 + $0x60] sm:$0xff]
        %v465 = vld [vmem:[%s451 + $0x68] sm:$0xff]
        %v466 = vld [vmem:[%s451 + $0x70] sm:$0xff]
        %v467 = vld [vmem:[%s451 + $0x78] sm:$0xff]
        %468 = vmatprep.subr.mxu0 0.0
        %469 = vmatpush1.msra.mxu0 %v452
        %470 = vmatprep.subr.mxu0 0.0
        %471 = vmatpush1.msra.mxu0 %v453
        %472 = vmatprep.subr.mxu0 0.0
        %473 = vmatpush1.msra.mxu0 %v454
        %474 = vmatprep.subr.mxu0 0.0
        %475 = vmatpush1.msra.mxu0 %v455
        %476 = vmatprep.subr.mxu0 0.0
        %477 = vmatpush1.msra.mxu0 %v456
        %478 = vmatprep.subr.mxu0 0.0
        %479 = vmatpush1.msra.mxu0 %v457
        %480 = vmatprep.subr.mxu0 0.0
        %481 = vmatpush1.msra.mxu0 %v458
        %482 = vmatprep.subr.mxu0 0.0
        %483 = vmatpush1.msra.mxu0 %v459
        %484 = vmatprep.subr.mxu0 0.0
        %485 = vmatpush1.msra.mxu0 %v460
        %486 = vmatprep.subr.mxu0 0.0
        %487 = vmatpush1.msra.mxu0 %v461
        %488 = vmatprep.subr.mxu0 0.0
        %489 = vmatpush1.msra.mxu0 %v462
        %490 = vmatprep.subr.mxu0 0.0
        %491 = vmatpush1.msra.mxu0 %v463
        %492 = vmatprep.subr.mxu0 0.0
        %493 = vmatpush1.msra.mxu0 %v464
        %494 = vmatprep.subr.mxu0 0.0
        %495 = vmatpush1.msra.mxu0 %v465
        %496 = vmatprep.subr.mxu0 0.0
        %497 = vmatpush1.msra.mxu0 %v466
        %498 = vmatprep.subr.mxu0 0.0
        %499 = vmatpush1.msra.mxu0 %v467
        %500 = vmatprep.subr.mxu0 0.0
        %501 = vmatpush1.msra.mxu0 0.0
        %502 = vmatprep.subr.mxu0 0.0
        %503 = vmatpush1.msra.mxu0 0.0
        %504 = vmatprep.subr.mxu0 0.0
        %505 = vmatpush1.msra.mxu0 0.0
        %506 = vmatprep.subr.mxu0 0.0
        %507 = vmatpush1.msra.mxu0 0.0
        %508 = vmatprep.subr.mxu0 0.0
        %509 = vmatpush1.msra.mxu0 0.0
        %510 = vmatprep.subr.mxu0 0.0
        %511 = vmatpush1.msra.mxu0 0.0
        %512 = vmatprep.subr.mxu0 0.0
        %513 = vmatpush1.msra.mxu0 0.0
        %514 = vmatprep.subr.mxu0 0.0
        %515 = vmatpush1.msra.mxu0 0.0
        %516 = vmatprep.subr.mxu0 0.0
        %517 = vmatpush1.msra.mxu0 0.0
        %518 = vmatprep.subr.mxu0 0.0
        %519 = vmatpush1.msra.mxu0 0.0
        %520 = vmatprep.subr.mxu0 0.0
        %521 = vmatpush1.msra.mxu0 0.0
        %522 = vmatprep.subr.mxu0 0.0
        %523 = vmatpush1.msra.mxu0 0.0
        %524 = vmatprep.subr.mxu0 0.0
        %525 = vmatpush1.msra.mxu0 0.0
        %526 = vmatprep.subr.mxu0 0.0
        %527 = vmatpush1.msra.mxu0 0.0
        %528 = vmatprep.subr.mxu0 0.0
        %529 = vmatpush1.msra.mxu0 0.0
        %530 = vmatprep.subr.mxu0 0.0
        %531 = vmatpush1.msra.mxu0 0.0
        %532 = vmatprep.mubr.f32.mxu0 0.0
        %533 = vmatmul.mubr.f32.gmra.mrb[0].mxu0 %v450
        %v534 = vpop.f32.mrb[0].mxu0
        %v535 = vadd.f32 0.0, %v534
        %v536 = vpop.f32.mrb[0].mxu0
        %537 = vdwg.mxu0
        %v538 = vadd.f32 %v447, %v535
        %v540 = vlaneseq
        %v541 = vshrl.u32 %v540, 7
        %v542 = vsub.s32 0, %v541
        %v543 = vrot.slane %v271, %v542
        %v545 = vadd.f32 %v538, %v543
        %v546 = vmax.f32 %v545, 0.0
        %547 = vst [vmem:[#allocation2 + $0x1] sm:$0xff] %v546
        %v548 = vld [vmem:[#allocation2] sm:$0xff]
        %v549 = vld [vmem:[#allocation8] sm:$0xff]
        %v550 = vld [vmem:[#allocation8 + $0x8] sm:$0xff]
        %v551 = vld [vmem:[#allocation8 + $0x10] sm:$0xff]
        %v552 = vld [vmem:[#allocation8 + $0x18] sm:$0xff]
        %v553 = vld [vmem:[#allocation8 + $0x20] sm:$0xff]
        %v554 = vld [vmem:[#allocation8 + $0x28] sm:$0xff]
        %v555 = vld [vmem:[#allocation8 + $0x30] sm:$0xff]
        %v556 = vld [vmem:[#allocation8 + $0x38] sm:$0xff]
        %v557 = vld [vmem:[#allocation8 + $0x40] sm:$0xff]
        %v558 = vld [vmem:[#allocation8 + $0x48] sm:$0xff]
        %v559 = vld [vmem:[#allocation8 + $0x50] sm:$0xff]
        %v560 = vld [vmem:[#allocation8 + $0x58] sm:$0xff]
        %v561 = vld [vmem:[#allocation8 + $0x60] sm:$0xff]
        %v562 = vld [vmem:[#allocation8 + $0x68] sm:$0xff]
        %v563 = vld [vmem:[#allocation8 + $0x70] sm:$0xff]
        %v564 = vld [vmem:[#allocation8 + $0x78] sm:$0xff]
        %v565 = vld [vmem:[#allocation2 + $0x1] sm:$0xff]
        %s566 = scalar_lea.vmem [#allocation8], 128
        %v567 = vld [vmem:[%s566] sm:$0xff]
        %v568 = vld [vmem:[%s566 + $0x8] sm:$0xff]
        %v569 = vld [vmem:[%s566 + $0x10] sm:$0xff]
        %v570 = vld [vmem:[%s566 + $0x18] sm:$0xff]
        %v571 = vld [vmem:[%s566 + $0x20] sm:$0xff]
        %v572 = vld [vmem:[%s566 + $0x28] sm:$0xff]
        %v573 = vld [vmem:[%s566 + $0x30] sm:$0xff]
        %v574 = vld [vmem:[%s566 + $0x38] sm:$0xff]
        %v575 = vld [vmem:[%s566 + $0x40] sm:$0xff]
        %v576 = vld [vmem:[%s566 + $0x48] sm:$0xff]
        %v577 = vld [vmem:[%s566 + $0x50] sm:$0xff]
        %v578 = vld [vmem:[%s566 + $0x58] sm:$0xff]
        %v579 = vld [vmem:[%s566 + $0x60] sm:$0xff]
        %v580 = vld [vmem:[%s566 + $0x68] sm:$0xff]
        %v581 = vld [vmem:[%s566 + $0x70] sm:$0xff]
        %v582 = vld [vmem:[%s566 + $0x78] sm:$0xff]
        %583 = vmatprep.subr.mxu0 0.0
        %584 = vmatpush1.msra.mxu0 %v567
        %585 = vmatprep.subr.mxu0 0.0
        %586 = vmatpush1.msra.mxu0 %v568
        %587 = vmatprep.subr.mxu0 0.0
        %588 = vmatpush1.msra.mxu0 %v569
        %589 = vmatprep.subr.mxu0 0.0
        %590 = vmatpush1.msra.mxu0 %v570
        %591 = vmatprep.subr.mxu0 0.0
        %592 = vmatpush1.msra.mxu0 %v571
        %593 = vmatprep.subr.mxu0 0.0
        %594 = vmatpush1.msra.mxu0 %v572
        %595 = vmatprep.subr.mxu0 0.0
        %596 = vmatpush1.msra.mxu0 %v573
        %597 = vmatprep.subr.mxu0 0.0
        %598 = vmatpush1.msra.mxu0 %v574
        %599 = vmatprep.subr.mxu0 0.0
        %600 = vmatpush1.msra.mxu0 %v575
        %601 = vmatprep.subr.mxu0 0.0
        %602 = vmatpush1.msra.mxu0 %v576
        %603 = vmatprep.subr.mxu0 0.0
        %604 = vmatpush1.msra.mxu0 %v577
        %605 = vmatprep.subr.mxu0 0.0
        %606 = vmatpush1.msra.mxu0 %v578
        %607 = vmatprep.subr.mxu0 0.0
        %608 = vmatpush1.msra.mxu0 %v579
        %609 = vmatprep.subr.mxu0 0.0
        %610 = vmatpush1.msra.mxu0 %v580
        %611 = vmatprep.subr.mxu0 0.0
        %612 = vmatpush1.msra.mxu0 %v581
        %613 = vmatprep.subr.mxu0 0.0
        %614 = vmatpush1.msra.mxu0 %v582
        %615 = vmatprep.subr.mxu0 0.0
        %616 = vmatpush1.msra.mxu0 0.0
        %617 = vmatprep.subr.mxu0 0.0
        %618 = vmatpush1.msra.mxu0 0.0
        %619 = vmatprep.subr.mxu0 0.0
        %620 = vmatpush1.msra.mxu0 0.0
        %621 = vmatprep.subr.mxu0 0.0
        %622 = vmatpush1.msra.mxu0 0.0
        %623 = vmatprep.subr.mxu0 0.0
        %624 = vmatpush1.msra.mxu0 0.0
        %625 = vmatprep.subr.mxu0 0.0
        %626 = vmatpush1.msra.mxu0 0.0
        %627 = vmatprep.subr.mxu0 0.0
        %628 = vmatpush1.msra.mxu0 0.0
        %629 = vmatprep.subr.mxu0 0.0
        %630 = vmatpush1.msra.mxu0 0.0
        %631 = vmatprep.subr.mxu0 0.0
        %632 = vmatpush1.msra.mxu0 0.0
        %633 = vmatprep.subr.mxu0 0.0
        %634 = vmatpush1.msra.mxu0 0.0
        %635 = vmatprep.subr.mxu0 0.0
        %636 = vmatpush1.msra.mxu0 0.0
        %637 = vmatprep.subr.mxu0 0.0
        %638 = vmatpush1.msra.mxu0 0.0
        %639 = vmatprep.subr.mxu0 0.0
        %640 = vmatpush1.msra.mxu0 0.0
        %641 = vmatprep.subr.mxu0 0.0
        %642 = vmatpush1.msra.mxu0 0.0
        %643 = vmatprep.subr.mxu0 0.0
        %644 = vmatpush1.msra.mxu0 0.0
        %645 = vmatprep.subr.mxu0 0.0
        %646 = vmatpush1.msra.mxu0 0.0
        %647 = vmatprep.mubr.f32.mxu0 0.0
        %648 = vmatmul.mubr.f32.gmra.mrb[0].mxu0 %v565
        %v649 = vpop.f32.mrb[0].mxu0
        %v650 = vadd.f32 0.0, %v649
        %v651 = vpop.f32.mrb[0].mxu0
        %652 = vdwg.mxu0
        %653 = vmatprep.subr.mxu0 0.0
        %654 = vmatpush1.msra.mxu0 %v549
        %655 = vmatprep.subr.mxu0 0.0
        %656 = vmatpush1.msra.mxu0 %v550
        %657 = vmatprep.subr.mxu0 0.0
        %658 = vmatpush1.msra.mxu0 %v551
        %659 = vmatprep.subr.mxu0 0.0
        %660 = vmatpush1.msra.mxu0 %v552
        %661 = vmatprep.subr.mxu0 0.0
        %662 = vmatpush1.msra.mxu0 %v553
        %663 = vmatprep.subr.mxu0 0.0
        %664 = vmatpush1.msra.mxu0 %v554
        %665 = vmatprep.subr.mxu0 0.0
        %666 = vmatpush1.msra.mxu0 %v555
        %667 = vmatprep.subr.mxu0 0.0
        %668 = vmatpush1.msra.mxu0 %v556
        %669 = vmatprep.subr.mxu0 0.0
        %670 = vmatpush1.msra.mxu0 %v557
        %671 = vmatprep.subr.mxu0 0.0
        %672 = vmatpush1.msra.mxu0 %v558
        %673 = vmatprep.subr.mxu0 0.0
        %674 = vmatpush1.msra.mxu0 %v559
        %675 = vmatprep.subr.mxu0 0.0
        %676 = vmatpush1.msra.mxu0 %v560
        %677 = vmatprep.subr.mxu0 0.0
        %678 = vmatpush1.msra.mxu0 %v561
        %679 = vmatprep.subr.mxu0 0.0
        %680 = vmatpush1.msra.mxu0 %v562
        %681 = vmatprep.subr.mxu0 0.0
        %682 = vmatpush1.msra.mxu0 %v563
        %683 = vmatprep.subr.mxu0 0.0
        %684 = vmatpush1.msra.mxu0 %v564
        %685 = vmatprep.subr.mxu0 0.0
        %686 = vmatpush1.msra.mxu0 0.0
        %687 = vmatprep.subr.mxu0 0.0
        %688 = vmatpush1.msra.mxu0 0.0
        %689 = vmatprep.subr.mxu0 0.0
        %690 = vmatpush1.msra.mxu0 0.0
        %691 = vmatprep.subr.mxu0 0.0
        %692 = vmatpush1.msra.mxu0 0.0
        %693 = vmatprep.subr.mxu0 0.0
        %694 = vmatpush1.msra.mxu0 0.0
        %695 = vmatprep.subr.mxu0 0.0
        %696 = vmatpush1.msra.mxu0 0.0
        %697 = vmatprep.subr.mxu0 0.0
        %698 = vmatpush1.msra.mxu0 0.0
        %699 = vmatprep.subr.mxu0 0.0
        %700 = vmatpush1.msra.mxu0 0.0
        %701 = vmatprep.subr.mxu0 0.0
        %702 = vmatpush1.msra.mxu0 0.0
        %703 = vmatprep.subr.mxu0 0.0
        %704 = vmatpush1.msra.mxu0 0.0
        %705 = vmatprep.subr.mxu0 0.0
        %706 = vmatpush1.msra.mxu0 0.0
        %707 = vmatprep.subr.mxu0 0.0
        %708 = vmatpush1.msra.mxu0 0.0
        %709 = vmatprep.subr.mxu0 0.0
        %710 = vmatpush1.msra.mxu0 0.0
        %711 = vmatprep.subr.mxu0 0.0
        %712 = vmatpush1.msra.mxu0 0.0
        %713 = vmatprep.subr.mxu0 0.0
        %714 = vmatpush1.msra.mxu0 0.0
        %715 = vmatprep.subr.mxu0 0.0
        %716 = vmatpush1.msra.mxu0 0.0
        %717 = vmatprep.mubr.f32.mxu0 0.0
        %718 = vmatmul.mubr.f32.gmra.mrb[0].mxu0 %v548
        %v719 = vpop.f32.mrb[0].mxu0
        %v720 = vadd.f32 %v650, %v719
        %v721 = vpop.f32.mrb[0].mxu0
        %722 = vdwg.mxu0
        %v723 = vld [vmem:[#allocation2 + $0x2] sm:$0xff]
        %s724 = scalar_lea.vmem [#allocation8], 256
        %v725 = vld [vmem:[%s724] sm:$0xff]
        %v726 = vld [vmem:[%s724 + $0x8] sm:$0xff]
        %v727 = vld [vmem:[%s724 + $0x10] sm:$0xff]
        %v728 = vld [vmem:[%s724 + $0x18] sm:$0xff]
        %v729 = vld [vmem:[%s724 + $0x20] sm:$0xff]
        %v730 = vld [vmem:[%s724 + $0x28] sm:$0xff]
        %v731 = vld [vmem:[%s724 + $0x30] sm:$0xff]
        %v732 = vld [vmem:[%s724 + $0x38] sm:$0xff]
        %v733 = vld [vmem:[%s724 + $0x40] sm:$0xff]
        %v734 = vld [vmem:[%s724 + $0x48] sm:$0xff]
        %v735 = vld [vmem:[%s724 + $0x50] sm:$0xff]
        %v736 = vld [vmem:[%s724 + $0x58] sm:$0xff]
        %v737 = vld [vmem:[%s724 + $0x60] sm:$0xff]
        %v738 = vld [vmem:[%s724 + $0x68] sm:$0xff]
        %v739 = vld [vmem:[%s724 + $0x70] sm:$0xff]
        %v740 = vld [vmem:[%s724 + $0x78] sm:$0xff]
        %741 = vmatprep.subr.mxu0 0.0
        %742 = vmatpush1.msra.mxu0 %v725
        %743 = vmatprep.subr.mxu0 0.0
        %744 = vmatpush1.msra.mxu0 %v726
        %745 = vmatprep.subr.mxu0 0.0
        %746 = vmatpush1.msra.mxu0 %v727
        %747 = vmatprep.subr.mxu0 0.0
        %748 = vmatpush1.msra.mxu0 %v728
        %749 = vmatprep.subr.mxu0 0.0
        %750 = vmatpush1.msra.mxu0 %v729
        %751 = vmatprep.subr.mxu0 0.0
        %752 = vmatpush1.msra.mxu0 %v730
        %753 = vmatprep.subr.mxu0 0.0
        %754 = vmatpush1.msra.mxu0 %v731
        %755 = vmatprep.subr.mxu0 0.0
        %756 = vmatpush1.msra.mxu0 %v732
        %757 = vmatprep.subr.mxu0 0.0
        %758 = vmatpush1.msra.mxu0 %v733
        %759 = vmatprep.subr.mxu0 0.0
        %760 = vmatpush1.msra.mxu0 %v734
        %761 = vmatprep.subr.mxu0 0.0
        %762 = vmatpush1.msra.mxu0 %v735
        %763 = vmatprep.subr.mxu0 0.0
        %764 = vmatpush1.msra.mxu0 %v736
        %765 = vmatprep.subr.mxu0 0.0
        %766 = vmatpush1.msra.mxu0 %v737
        %767 = vmatprep.subr.mxu0 0.0
        %768 = vmatpush1.msra.mxu0 %v738
        %769 = vmatprep.subr.mxu0 0.0
        %770 = vmatpush1.msra.mxu0 %v739
        %771 = vmatprep.subr.mxu0 0.0
        %772 = vmatpush1.msra.mxu0 %v740
        %773 = vmatprep.subr.mxu0 0.0
        %774 = vmatpush1.msra.mxu0 0.0
        %775 = vmatprep.subr.mxu0 0.0
        %776 = vmatpush1.msra.mxu0 0.0
        %777 = vmatprep.subr.mxu0 0.0
        %778 = vmatpush1.msra.mxu0 0.0
        %779 = vmatprep.subr.mxu0 0.0
        %780 = vmatpush1.msra.mxu0 0.0
        %781 = vmatprep.subr.mxu0 0.0
        %782 = vmatpush1.msra.mxu0 0.0
        %783 = vmatprep.subr.mxu0 0.0
        %784 = vmatpush1.msra.mxu0 0.0
        %785 = vmatprep.subr.mxu0 0.0
        %786 = vmatpush1.msra.mxu0 0.0
        %787 = vmatprep.subr.mxu0 0.0
        %788 = vmatpush1.msra.mxu0 0.0
        %789 = vmatprep.subr.mxu0 0.0
        %790 = vmatpush1.msra.mxu0 0.0
        %791 = vmatprep.subr.mxu0 0.0
        %792 = vmatpush1.msra.mxu0 0.0
        %793 = vmatprep.subr.mxu0 0.0
        %794 = vmatpush1.msra.mxu0 0.0
        %795 = vmatprep.subr.mxu0 0.0
        %796 = vmatpush1.msra.mxu0 0.0
        %797 = vmatprep.subr.mxu0 0.0
        %798 = vmatpush1.msra.mxu0 0.0
        %799 = vmatprep.subr.mxu0 0.0
        %800 = vmatpush1.msra.mxu0 0.0
        %801 = vmatprep.subr.mxu0 0.0
        %802 = vmatpush1.msra.mxu0 0.0
        %803 = vmatprep.subr.mxu0 0.0
        %804 = vmatpush1.msra.mxu0 0.0
        %805 = vmatprep.mubr.f32.mxu0 0.0
        %806 = vmatmul.mubr.f32.gmra.mrb[0].mxu0 %v723
        %v807 = vpop.f32.mrb[0].mxu0
        %v808 = vadd.f32 0.0, %v807
        %v809 = vpop.f32.mrb[0].mxu0
        %810 = vdwg.mxu0
        %v811 = vadd.f32 %v720, %v808
        %v813 = vlaneseq
        %v814 = vshrl.u32 %v813, 7
        %v815 = vsub.s32 0, %v814
        %v816 = vrot.slane %v272, %v815
        %v818 = vadd.f32 %v811, %v816
        %v819 = vadd.f32 %v818, %v273
        %v820 = vmax.f32 %v819, 0.0
        %821 = vst [vmem:[%s268] sm:$0xff] %v820
        %s822 = sand.u32 %s141, 1
        %s823 = scalar_lea.sflag [#allocation5], %s822
        %s824 = sand.u32 %s141, 1
        %s825 = smul.addr %s824, 8
        %s826 = scalar_lea.vmem [#allocation9], %s825
        // Predicated region
        $region53: #{tpu_custom_call.1} parent=39 // pred_check
          %p827 = pneg %p151
        $region54: #{tpu_custom_call.1} parent=39 // pred_check_branch
          %829 = sbr.rel (%p827) target = $region56
        $region55: #{tpu_custom_call.1} parent=39 // pred_region
          %s831 = ssub.s32 128, 128
          %832 = vsyncadd %s823, %s831
          %s833 = smul.addr %s23, 128
          %s834 = scalar_lea.hbm %s5, %s833
          %s836 = sshll.u32 %s826, 4
          %s837 = int_to_ptr.vmem [resolvable:$true] %s836
          %839 = dma.vmem_to_hbm [thread:$0]  %s837, 128, %s834, %s823
        $region56: #{tpu_custom_call.1} parent=39 // pred_fallthru
          _
      $region40: #{tpu_custom_call.1} parent=5 // pred_fallthru
        _
      %p840 = scmp.le.s32.totalorder 2, %s18
      // Predicated region
      $region57: #{tpu_custom_call.1} parent=5 // pred_check
        %p841 = pneg %p840
      $region58: #{tpu_custom_call.1} parent=5 // pred_check_branch
        %843 = sbr.rel (%p841) target = $region60
      $region59: #{tpu_custom_call.1} parent=5 // pred_region
        %s844 = ssub.s32 %s18, 2
        // Predicated region
        $region61: #{tpu_custom_call.1} parent=59 // pred_check
          %p845 = pneg %p157
        $region62: #{tpu_custom_call.1} parent=59 // pred_check_branch
          %847 = sbr.rel (%p845) target = $region64
        $region63: #{tpu_custom_call.1} parent=59 // pred_region
          %s848 = sand.u32 %s142, 1
          %s849 = scalar_lea.sflag [#allocation5], %s848
          %s850 = sand.u32 %s142, 1
          %s851 = smul.addr %s850, 8
          %s852 = scalar_lea.vmem [#allocation9], %s851
          %853 = dma.done %s849, 128
        $region64: #{tpu_custom_call.1} parent=59 // pred_fallthru
          _
      $region60: #{tpu_custom_call.1} parent=5 // pred_fallthru
        _
    $region6: #{tpu_custom_call.1} parent=1 // loop_footer
      %s22 = sadd.s32 1, %s18
    $region7: #{tpu_custom_call.1} parent=1 // loop_footer_branch
      %17 = sbr.rel target = $region3
    $region8: #{tpu_custom_call.1} parent=1 // loop_exit
      _
    %854 = vsyncpa [#allocation4], 1
    %s855 = scalar_lea.sflag [#allocation4], 1
    %856 = vsyncpa %s855, 1
    %857 = vsyncpa [#allocation7], 1
    %858 = vsyncpa [#allocation5], 1
    %s859 = scalar_lea.sflag [#allocation5], 1
    %860 = vsyncpa %s859, 1

</llo_original>
